<compile_context>
chip_gen: v7x
topology: tpu7x:2x2x1
jax: 0.10.0
libtpu: 0.0.40
codegen_flags: <defaults>
</compile_context>

<pallas_src>
import jax
import jax.numpy as jnp
from jax.experimental import pallas as pl
from jax.experimental.pallas import tpu as pltpu


# ---------------------------------------------------------------- kernel ----

def _make_kernel(height, width, lpad):
    hw = height * width

    def kernel(x_ref, w_ref, b_ref, o_ref, pad_ref):
        # x_ref  : (B*Cin,  HW)           lane-dense NCHW-flattened input
        # w_ref  : (9, B*Cout, B*Cin)     per-tap block-diagonal (over batch) weights
        # b_ref  : (B*Cout, 1)            bias column
        # o_ref  : (B*Cout, HW)           lane-dense NCHW-flattened output
        # pad_ref: (B*Cin, HW + 2*lpad)   zero-padded scratch copy of x
        rows = x_ref.shape[0]

        # Zero-padded flat copy of x so every tap's shifted read is a plain static
        # slice; out-of-image reads along h land in the zero border ('same' padding).
        pad_ref[...] = jnp.zeros(pad_ref.shape, pad_ref.dtype)
        pad_ref[:, lpad:lpad + hw] = x_ref[...].astype(pad_ref.dtype)

        # Per-lane column (w coordinate) for masking reads that wrapped across an
        # image row (the zero border only catches h-overflow, not row wrap).
        col = jax.lax.broadcasted_iota(jnp.int32, (rows, hw), 1) % width
        left_ok = col >= 1              # valid when reading the pixel to the left  (dw=-1)
        right_ok = col <= width - 2     # valid when reading the pixel to the right (dw=+1)

        acc = jnp.zeros(o_ref.shape, jnp.float32)
        for kh in range(3):
            for kw in range(3):
                dh, dw = kh - 1, kw - 1
                shift = dh * width + dw
                xs = pad_ref[:, lpad + shift: lpad + shift + hw]
                if dw == 1:
                    xs = jnp.where(right_ok, xs, 0.0)
                elif dw == -1:
                    xs = jnp.where(left_ok, xs, 0.0)
                # One MXU matmul per tap covering all batches (block-diagonal weights);
                # accumulating matmuls are cheap (MRB in-place accumulate on v7x).
                acc = acc + jnp.dot(w_ref[kh * 3 + kw], xs,
                                    preferred_element_type=jnp.float32)

        o_ref[...] = (acc + b_ref[...]).astype(o_ref.dtype)

    return kernel


# --------------------------------------------------------------- wrapper ----

def make_tta_compose(w, b, batch):
    """TTACompose([identity, hflip, vflip], model=3x3 'same' conv) forward.

    w: (3, 3, Cin, Cout), b: (Cout,). Returns a jitted fn of x: (batch, Cin, H, W).
    All weight preprocessing is done ONCE here and closed over by the jitted forward.
    """
    kh_, kw_, cin, cout = w.shape
    assert (kh_, kw_) == (3, 3), "kernel assumes a 3x3 stride-1 'same' conv model"

    # Fold the self-inverse flips into the conv weights
    #   hflip(conv(hflip(x), w)) == conv(x, flip_kw(w)),  vflip <-> flip_kh,
    # then use linearity of the model to pre-average the three TTA variants.
    w_avg = (w + jnp.flip(w, axis=1) + jnp.flip(w, axis=0)) / 3.0          # (3,3,Ci,Co)

    # Per-tap (Cout, Cin) matrices, expanded block-diagonally over batch so one matmul
    # per tap handles the whole batch with zero-copy NCHW-flattened activations.
    w_taps = jnp.transpose(w_avg, (0, 1, 3, 2)).reshape(9, cout, cin)      # (9,Co,Ci)
    eye_b = jnp.eye(batch, dtype=w.dtype)
    w_blk = jnp.einsum("koc,ab->kaobc", w_taps, eye_b).reshape(
        9, batch * cout, batch * cin)                                      # (9,B*Co,B*Ci)
    bias = jnp.tile(b, batch).reshape(batch * cout, 1).astype(jnp.float32)

    lpad = 128   # zero border per row-plane; >= 3x3 reach (W+1), vreg-lane aligned

    @jax.jit
    def forward(x):
        bsz, c, height, width = x.shape
        assert bsz == batch and c == cin
        hw = height * width
        rows_in, rows_out = bsz * cin, bsz * cout

        x2d = x.reshape(rows_in, hw)                    # zero-copy NCHW flatten

        out = pl.pallas_call(
            _make_kernel(height, width, lpad),
            out_shape=jax.ShapeDtypeStruct((rows_out, hw), x.dtype),
            grid=(1,),                                  # whole problem in one VMEM block
            in_specs=[
                pl.BlockSpec((rows_in, hw), lambda i: (0, 0)),
                pl.BlockSpec((9, rows_out, rows_in), lambda i: (0, 0, 0)),
                pl.BlockSpec((rows_out, 1), lambda i: (0, 0)),
            ],
            out_specs=pl.BlockSpec((rows_out, hw), lambda i: (0, 0)),
            scratch_shapes=[pltpu.VMEM((rows_in, hw + 2 * lpad), jnp.float32)],
            compiler_params=pltpu.CompilerParams(
                dimension_semantics=("arbitrary",)),
        )(x2d, w_blk, bias)

        return out.reshape(bsz, cout, height, width)    # zero-copy back to NCHW

    return forward


# ------------------------------------------------------------------- main ---

if __name__ == "__main__":
    key = jax.random.PRNGKey(0)
    kx, kw, kb = jax.random.split(key, 3)

    B, C, H, W = 2, 4, 16, 16
    Cout = 4
    x = jax.random.normal(kx, (B, C, H, W), jnp.float32)
    w = jax.random.normal(kw, (3, 3, C, Cout), jnp.float32) * 0.1   # fixed conv weight
    b = jax.random.normal(kb, (Cout,), jnp.float32) * 0.1           # fixed bias

    forward = make_tta_compose(w, b, batch=B)
    out = jax.block_until_ready(forward(x))

    # Pure-JAX reference with the literal TTACompose structure (3 model evals, mean).
    def ref_model(a):
        return jax.lax.conv_general_dilated(
            a, jnp.transpose(w, (3, 2, 0, 1)), window_strides=(1, 1), padding="SAME",
            dimension_numbers=("NCHW", "OIHW", "NCHW")) + b[None, :, None, None]

    ttas = [(lambda a: a, lambda a: a),
            (lambda a: jnp.flip(a, 3), lambda a: jnp.flip(a, 3)),
            (lambda a: jnp.flip(a, 2), lambda a: jnp.flip(a, 2))]
    ref = sum(bwd(ref_model(fwd(x))) for fwd, bwd in ttas) / float(len(ttas))

    assert out.shape == (B, Cout, H, W)
    assert jnp.allclose(out, ref, atol=1e-4, rtol=1e-4), "mismatch vs reference"
    print("KERNEL_OK")
</pallas_src>

<mosaic_0001>
module attributes {stable_mosaic.version = 11 : i64} {
  func.func @kernel(%arg0: i32, %arg1: memref<8x256xf32, #tpu.memory_space<vmem>>, %arg2: memref<9x8x8xf32, #tpu.memory_space<vmem>>, %arg3: memref<8x1xf32, #tpu.memory_space<vmem>>, %arg4: memref<8x256xf32, #tpu.memory_space<vmem>>, %arg5: memref<8x512xf32, #tpu.memory_space<vmem>>) attributes {dimension_semantics = [#tpu.dimension_semantics<arbitrary>], iteration_bounds = array<i64: 1>, scalar_prefetch = 0 : i64, scratch_operands = 1 : i64, tpu.core_type = #tpu.core_type<tc>, window_params = [{pipeline_mode = #tpu.pipeline_mode<synchronous>, transform_indices = @transform_0, window_bounds = array<i64: 8, 256>}, {pipeline_mode = #tpu.pipeline_mode<synchronous>, transform_indices = @transform_1, window_bounds = array<i64: 9, 8, 8>}, {pipeline_mode = #tpu.pipeline_mode<synchronous>, transform_indices = @transform_2, window_bounds = array<i64: 8, 1>}, {pipeline_mode = #tpu.pipeline_mode<synchronous>, transform_indices = @transform_3, window_bounds = array<i64: 8, 256>}]} {
    %cst = arith.constant 0.000000e+00 : f32
    %0 = vector.broadcast %cst : f32 to vector<8x512xf32>
    %c0 = arith.constant 0 : index
    %c0_0 = arith.constant 0 : index
    %1 = vector.load %arg5[%c0, %c0_0] : memref<8x512xf32, #tpu.memory_space<vmem>>, vector<8x512xf32>
    tpu.vector_store %arg5[%c0, %c0_0], %0 {strides = array<i32>} : memref<8x512xf32, #tpu.memory_space<vmem>>, vector<8x512xf32>,
    %c0_1 = arith.constant 0 : index
    %c0_2 = arith.constant 0 : index
    %2 = vector.load %arg1[%c0_1, %c0_2] : memref<8x256xf32, #tpu.memory_space<vmem>>, vector<8x256xf32>
    %c0_3 = arith.constant 0 : index
    %c128 = arith.constant 128 : index
    %3 = vector.load %arg5[%c0_3, %c128] : memref<8x512xf32, #tpu.memory_space<vmem>>, vector<8x256xf32>
    tpu.vector_store %arg5[%c0_3, %c128], %2 {strides = array<i32>} : memref<8x512xf32, #tpu.memory_space<vmem>>, vector<8x256xf32>,
    %4 = tpu.iota {dimensions = array<i32: 1>} : vector<8x256xi32>
    %c16_i32 = arith.constant 16 : i32
    %c0_i32 = arith.constant 0 : i32
    %5 = arith.cmpi eq, %c16_i32, %c0_i32 : i32
    %c1_i32 = arith.constant 1 : i32
    %6 = arith.select %5, %c1_i32, %c16_i32 : i32
    %7 = vector.broadcast %6 : i32 to vector<8x256xi32>
    %8 = arith.remsi %4, %7 : vector<8x256xi32>
    %c0_i32_4 = arith.constant 0 : i32
    %9 = vector.broadcast %c0_i32_4 : i32 to vector<8x256xi32>
    %10 = arith.cmpi ne, %8, %9 : vector<8x256xi32>
    %c0_i32_5 = arith.constant 0 : i32
    %11 = vector.broadcast %c0_i32_5 : i32 to vector<8x256xi32>
    %12 = arith.cmpi slt, %8, %11 : vector<8x256xi32>
    %c0_i32_6 = arith.constant 0 : i32
    %13 = arith.cmpi slt, %6, %c0_i32_6 : i32
    %14 = vector.broadcast %13 : i1 to vector<8x256xi1>
    %15 = vector.broadcast %14 : vector<8x256xi1> to vector<8x256xi1>
    %16 = arith.xori %12, %15 : vector<8x256xi1>
    %17 = arith.andi %16, %10 : vector<8x256xi1>
    %18 = vector.broadcast %6 : i32 to vector<8x256xi32>
    %19 = arith.addi %8, %18 : vector<8x256xi32>
    %20 = arith.select %17, %19, %8 : vector<8x256xi1>, vector<8x256xi32>
    %c1_i32_7 = arith.constant 1 : i32
    %21 = vector.broadcast %c1_i32_7 : i32 to vector<8x256xi32>
    %22 = arith.cmpi sge, %20, %21 : vector<8x256xi32>
    %c14_i32 = arith.constant 14 : i32
    %23 = vector.broadcast %c14_i32 : i32 to vector<8x256xi32>
    %24 = arith.cmpi sle, %20, %23 : vector<8x256xi32>
    %cst_8 = arith.constant 0.000000e+00 : f32
    %25 = vector.broadcast %cst_8 : f32 to vector<8x256xf32>
    %c0_9 = arith.constant 0 : index
    %c111 = arith.constant 111 : index
    %26 = vector.load %arg5[%c0_9, %c111] : memref<8x512xf32, #tpu.memory_space<vmem>>, vector<8x256xf32>
    %cst_10 = arith.constant 0.000000e+00 : f32
    %27 = vector.broadcast %cst_10 : f32 to vector<8x256xf32>
    %28 = arith.select %22, %26, %27 : vector<8x256xi1>, vector<8x256xf32>
    %c0_11 = arith.constant 0 : index
    %c0_12 = arith.constant 0 : index
    %c0_13 = arith.constant 0 : index
    %29 = vector.load %arg2[%c0_11, %c0_12, %c0_13] : memref<9x8x8xf32, #tpu.memory_space<vmem>>, vector<1x8x8xf32>
    %30 = vector.shape_cast %29 : vector<1x8x8xf32> to vector<8x8xf32>
    %cst_14 = arith.constant dense<0.000000e+00> : vector<8x256xf32>
    %31 = tpu.matmul %30, %28, %cst_14 {dimension_numbers = #tpu.dot_dimension_numbers<[1], [0], [0], [1], [0, 0, 1, 1], [], []>} : vector<8x8xf32>, vector<8x256xf32>, vector<8x256xf32> -> vector<8x256xf32>
    %32 = arith.addf %25, %31 : vector<8x256xf32>
    %c0_15 = arith.constant 0 : index
    %c112 = arith.constant 112 : index
    %33 = vector.load %arg5[%c0_15, %c112] : memref<8x512xf32, #tpu.memory_space<vmem>>, vector<8x256xf32>
    %c1 = arith.constant 1 : index
    %c0_16 = arith.constant 0 : index
    %c0_17 = arith.constant 0 : index
    %34 = vector.load %arg2[%c1, %c0_16, %c0_17] : memref<9x8x8xf32, #tpu.memory_space<vmem>>, vector<1x8x8xf32>
    %35 = vector.shape_cast %34 : vector<1x8x8xf32> to vector<8x8xf32>
    %cst_18 = arith.constant dense<0.000000e+00> : vector<8x256xf32>
    %36 = tpu.matmul %35, %33, %cst_18 {dimension_numbers = #tpu.dot_dimension_numbers<[1], [0], [0], [1], [0, 0, 1, 1], [], []>} : vector<8x8xf32>, vector<8x256xf32>, vector<8x256xf32> -> vector<8x256xf32>
    %37 = arith.addf %32, %36 : vector<8x256xf32>
    %c0_19 = arith.constant 0 : index
    %c113 = arith.constant 113 : index
    %38 = vector.load %arg5[%c0_19, %c113] : memref<8x512xf32, #tpu.memory_space<vmem>>, vector<8x256xf32>
    %cst_20 = arith.constant 0.000000e+00 : f32
    %39 = vector.broadcast %cst_20 : f32 to vector<8x256xf32>
    %40 = arith.select %24, %38, %39 : vector<8x256xi1>, vector<8x256xf32>
    %c2 = arith.constant 2 : index
    %c0_21 = arith.constant 0 : index
    %c0_22 = arith.constant 0 : index
    %41 = vector.load %arg2[%c2, %c0_21, %c0_22] : memref<9x8x8xf32, #tpu.memory_space<vmem>>, vector<1x8x8xf32>
    %42 = vector.shape_cast %41 : vector<1x8x8xf32> to vector<8x8xf32>
    %cst_23 = arith.constant dense<0.000000e+00> : vector<8x256xf32>
    %43 = tpu.matmul %42, %40, %cst_23 {dimension_numbers = #tpu.dot_dimension_numbers<[1], [0], [0], [1], [0, 0, 1, 1], [], []>} : vector<8x8xf32>, vector<8x256xf32>, vector<8x256xf32> -> vector<8x256xf32>
    %44 = arith.addf %37, %43 : vector<8x256xf32>
    %c0_24 = arith.constant 0 : index
    %c127 = arith.constant 127 : index
    %45 = vector.load %arg5[%c0_24, %c127] : memref<8x512xf32, #tpu.memory_space<vmem>>, vector<8x256xf32>
    %cst_25 = arith.constant 0.000000e+00 : f32
    %46 = vector.broadcast %cst_25 : f32 to vector<8x256xf32>
    %47 = arith.select %22, %45, %46 : vector<8x256xi1>, vector<8x256xf32>
    %c3 = arith.constant 3 : index
    %c0_26 = arith.constant 0 : index
    %c0_27 = arith.constant 0 : index
    %48 = vector.load %arg2[%c3, %c0_26, %c0_27] : memref<9x8x8xf32, #tpu.memory_space<vmem>>, vector<1x8x8xf32>
    %49 = vector.shape_cast %48 : vector<1x8x8xf32> to vector<8x8xf32>
    %cst_28 = arith.constant dense<0.000000e+00> : vector<8x256xf32>
    %50 = tpu.matmul %49, %47, %cst_28 {dimension_numbers = #tpu.dot_dimension_numbers<[1], [0], [0], [1], [0, 0, 1, 1], [], []>} : vector<8x8xf32>, vector<8x256xf32>, vector<8x256xf32> -> vector<8x256xf32>
    %51 = arith.addf %44, %50 : vector<8x256xf32>
    %c0_29 = arith.constant 0 : index
    %c128_30 = arith.constant 128 : index
    %52 = vector.load %arg5[%c0_29, %c128_30] : memref<8x512xf32, #tpu.memory_space<vmem>>, vector<8x256xf32>
    %c4 = arith.constant 4 : index
    %c0_31 = arith.constant 0 : index
    %c0_32 = arith.constant 0 : index
    %53 = vector.load %arg2[%c4, %c0_31, %c0_32] : memref<9x8x8xf32, #tpu.memory_space<vmem>>, vector<1x8x8xf32>
    %54 = vector.shape_cast %53 : vector<1x8x8xf32> to vector<8x8xf32>
    %cst_33 = arith.constant dense<0.000000e+00> : vector<8x256xf32>
    %55 = tpu.matmul %54, %52, %cst_33 {dimension_numbers = #tpu.dot_dimension_numbers<[1], [0], [0], [1], [0, 0, 1, 1], [], []>} : vector<8x8xf32>, vector<8x256xf32>, vector<8x256xf32> -> vector<8x256xf32>
    %56 = arith.addf %51, %55 : vector<8x256xf32>
    %c0_34 = arith.constant 0 : index
    %c129 = arith.constant 129 : index
    %57 = vector.load %arg5[%c0_34, %c129] : memref<8x512xf32, #tpu.memory_space<vmem>>, vector<8x256xf32>
    %cst_35 = arith.constant 0.000000e+00 : f32
    %58 = vector.broadcast %cst_35 : f32 to vector<8x256xf32>
    %59 = arith.select %24, %57, %58 : vector<8x256xi1>, vector<8x256xf32>
    %c5 = arith.constant 5 : index
    %c0_36 = arith.constant 0 : index
    %c0_37 = arith.constant 0 : index
    %60 = vector.load %arg2[%c5, %c0_36, %c0_37] : memref<9x8x8xf32, #tpu.memory_space<vmem>>, vector<1x8x8xf32>
    %61 = vector.shape_cast %60 : vector<1x8x8xf32> to vector<8x8xf32>
    %cst_38 = arith.constant dense<0.000000e+00> : vector<8x256xf32>
    %62 = tpu.matmul %61, %59, %cst_38 {dimension_numbers = #tpu.dot_dimension_numbers<[1], [0], [0], [1], [0, 0, 1, 1], [], []>} : vector<8x8xf32>, vector<8x256xf32>, vector<8x256xf32> -> vector<8x256xf32>
    %63 = arith.addf %56, %62 : vector<8x256xf32>
    %c0_39 = arith.constant 0 : index
    %c143 = arith.constant 143 : index
    %64 = vector.load %arg5[%c0_39, %c143] : memref<8x512xf32, #tpu.memory_space<vmem>>, vector<8x256xf32>
    %cst_40 = arith.constant 0.000000e+00 : f32
    %65 = vector.broadcast %cst_40 : f32 to vector<8x256xf32>
    %66 = arith.select %22, %64, %65 : vector<8x256xi1>, vector<8x256xf32>
    %c6 = arith.constant 6 : index
    %c0_41 = arith.constant 0 : index
    %c0_42 = arith.constant 0 : index
    %67 = vector.load %arg2[%c6, %c0_41, %c0_42] : memref<9x8x8xf32, #tpu.memory_space<vmem>>, vector<1x8x8xf32>
    %68 = vector.shape_cast %67 : vector<1x8x8xf32> to vector<8x8xf32>
    %cst_43 = arith.constant dense<0.000000e+00> : vector<8x256xf32>
    %69 = tpu.matmul %68, %66, %cst_43 {dimension_numbers = #tpu.dot_dimension_numbers<[1], [0], [0], [1], [0, 0, 1, 1], [], []>} : vector<8x8xf32>, vector<8x256xf32>, vector<8x256xf32> -> vector<8x256xf32>
    %70 = arith.addf %63, %69 : vector<8x256xf32>
    %c0_44 = arith.constant 0 : index
    %c144 = arith.constant 144 : index
    %71 = vector.load %arg5[%c0_44, %c144] : memref<8x512xf32, #tpu.memory_space<vmem>>, vector<8x256xf32>
    %c7 = arith.constant 7 : index
    %c0_45 = arith.constant 0 : index
    %c0_46 = arith.constant 0 : index
    %72 = vector.load %arg2[%c7, %c0_45, %c0_46] : memref<9x8x8xf32, #tpu.memory_space<vmem>>, vector<1x8x8xf32>
    %73 = vector.shape_cast %72 : vector<1x8x8xf32> to vector<8x8xf32>
    %cst_47 = arith.constant dense<0.000000e+00> : vector<8x256xf32>
    %74 = tpu.matmul %73, %71, %cst_47 {dimension_numbers = #tpu.dot_dimension_numbers<[1], [0], [0], [1], [0, 0, 1, 1], [], []>} : vector<8x8xf32>, vector<8x256xf32>, vector<8x256xf32> -> vector<8x256xf32>
    %75 = arith.addf %70, %74 : vector<8x256xf32>
    %c0_48 = arith.constant 0 : index
    %c145 = arith.constant 145 : index
    %76 = vector.load %arg5[%c0_48, %c145] : memref<8x512xf32, #tpu.memory_space<vmem>>, vector<8x256xf32>
    %cst_49 = arith.constant 0.000000e+00 : f32
    %77 = vector.broadcast %cst_49 : f32 to vector<8x256xf32>
    %78 = arith.select %24, %76, %77 : vector<8x256xi1>, vector<8x256xf32>
    %c8 = arith.constant 8 : index
    %c0_50 = arith.constant 0 : index
    %c0_51 = arith.constant 0 : index
    %79 = vector.load %arg2[%c8, %c0_50, %c0_51] : memref<9x8x8xf32, #tpu.memory_space<vmem>>, vector<1x8x8xf32>
    %80 = vector.shape_cast %79 : vector<1x8x8xf32> to vector<8x8xf32>
    %cst_52 = arith.constant dense<0.000000e+00> : vector<8x256xf32>
    %81 = tpu.matmul %80, %78, %cst_52 {dimension_numbers = #tpu.dot_dimension_numbers<[1], [0], [0], [1], [0, 0, 1, 1], [], []>} : vector<8x8xf32>, vector<8x256xf32>, vector<8x256xf32> -> vector<8x256xf32>
    %82 = arith.addf %75, %81 : vector<8x256xf32>
    %c0_53 = arith.constant 0 : index
    %c0_54 = arith.constant 0 : index
    %83 = vector.load %arg3[%c0_53, %c0_54] : memref<8x1xf32, #tpu.memory_space<vmem>>, vector<8x1xf32>
    %84 = vector.broadcast %83 : vector<8x1xf32> to vector<8x256xf32>
    %85 = arith.addf %82, %84 : vector<8x256xf32>
    %c0_55 = arith.constant 0 : index
    %c0_56 = arith.constant 0 : index
    %86 = vector.load %arg4[%c0_55, %c0_56] : memref<8x256xf32, #tpu.memory_space<vmem>>, vector<8x256xf32>
    tpu.vector_store %arg4[%c0_55, %c0_56], %85 {strides = array<i32>} : memref<8x256xf32, #tpu.memory_space<vmem>>, vector<8x256xf32>,
    return
  }
  func.func @transform_0(%arg0: i32) -> (i32, i32) {
    %c0_i32 = arith.constant 0 : i32
    %c0_i32_0 = arith.constant 0 : i32
    %c0_i32_1 = arith.constant 0 : i32
    return %c0_i32, %c0_i32_0 : i32, i32
  }
  func.func @transform_1(%arg0: i32) -> (i32, i32, i32) {
    %c0_i32 = arith.constant 0 : i32
    %c0_i32_0 = arith.constant 0 : i32
    %c0_i32_1 = arith.constant 0 : i32
    %c0_i32_2 = arith.constant 0 : i32
    return %c0_i32, %c0_i32_0, %c0_i32_1 : i32, i32, i32
  }
  func.func @transform_2(%arg0: i32) -> (i32, i32) {
    %c0_i32 = arith.constant 0 : i32
    %c0_i32_0 = arith.constant 0 : i32
    %c0_i32_1 = arith.constant 0 : i32
    return %c0_i32, %c0_i32_0 : i32, i32
  }
  func.func @transform_3(%arg0: i32) -> (i32, i32) {
    %c0_i32 = arith.constant 0 : i32
    %c0_i32_0 = arith.constant 0 : i32
    %c0_i32_1 = arith.constant 0 : i32
    return %c0_i32, %c0_i32_0 : i32, i32
  }
}

</mosaic_0001>

<llo_original>
// kernel: forward.1
$region0: #{forward.1}
  #allocation0 [shape = 'u32[]', space=smem, size = 0x4, offset = 0x4, fixed_abs, tag = 'smem constant byte address 0x4 - core index']
  #allocation1 [shape = 'u32[144,128]{1,0:T(1,128)}', space=vmem, size = 0x12000, scoped, tag = 'internal scratch']
  #allocation2 [shape = 'f32[8,512]{1,0:T(8,128)}', space=vmem, size = 0x4000, scoped, tag = 'scratch operand']
  %s0 = inlined_call_operand.vmem [shape: f32[8,256], index: 0, kind: input, shape index: {}]
  %s1 = inlined_call_operand.vmem [shape: f32[9,8,8], index: 1, kind: input, shape index: {}]
  %s2 = inlined_call_operand.vmem [shape: f32[8,1], index: 2, kind: input, shape index: {}]
  %s3 = inlined_call_operand.vmem [shape: f32[8,256], index: 3, kind: output, shape index: {}]
  %s4 = sld [smem:[#allocation0]]
  $region22: #{forward.1} parent=0
    _
  %s6 = ssub.s32 1, %s4
  %s7 = scalar_select 0, %s6, %s4
  // Predicated region
  $region2: #{forward.1} parent=0 // pred_check
    _
  $region3: #{forward.1} parent=0 // pred_check_branch
    %9 = sbr.rel (0) target = $region5
  $region4: #{forward.1} parent=0 // pred_region
    _
  $region5: #{forward.1} parent=0 // pred_fallthru
    _
  // Predicated region
  $region6: #{forward.1} parent=0 // pred_check
    _
  $region7: #{forward.1} parent=0 // pred_check_branch
    %11 = sbr.rel (0) target = $region9
  $region8: #{forward.1} parent=0 // pred_region
    _
  $region9: #{forward.1} parent=0 // pred_fallthru
    _
  // Predicated region
  $region10: #{forward.1} parent=0 // pred_check
    _
  $region11: #{forward.1} parent=0 // pred_check_branch
    %13 = sbr.rel (0) target = $region13
  $region12: #{forward.1} parent=0 // pred_region
    _
  $region13: #{forward.1} parent=0 // pred_fallthru
    _
  %14 = vst [vmem:[#allocation2] sm:$0xff] 0.0
  %15 = vst [vmem:[#allocation2 + $0x8] sm:$0xff] 0.0
  %16 = vst [vmem:[#allocation2 + $0x10] sm:$0xff] 0.0
  %17 = vst [vmem:[#allocation2 + $0x18] sm:$0xff] 0.0
  %v18 = vld [vmem:[%s0] sm:$0xff]
  %v19 = vld [vmem:[%s0 + $0x8] sm:$0xff]
  %20 = vst [vmem:[#allocation2 + $0x8] sm:$0xff] %v18
  %21 = vst [vmem:[#allocation2 + $0x10] sm:$0xff] %v19
  %v22 = vlaneseq
  %v23 = vand.u32 %v22, 127
  %v24 = vadd.s32 %v23, 128
  %vm25 = vcmp.lt.s32.totalorder %v23, 0
  %v26 = vsub.s32 0, %v23
  %v27 = vsel %vm25, %v26, %v23
  %v28 = vshrl.u32 %v27, 4
  %v29 = vand.u32 %v27, 15
  %v30 = vsub.s32 0, %v29
  %v31 = vsel %vm25, %v30, %v29
  %vm32 = vcmp.lt.s32.totalorder %v24, 0
  %v33 = vsub.s32 0, %v24
  %v34 = vsel %vm32, %v33, %v24
  %v35 = vshrl.u32 %v34, 4
  %v36 = vand.u32 %v34, 15
  %v37 = vsub.s32 0, %v36
  %v38 = vsel %vm32, %v37, %v36
  %vm39 = vcmp.ne.s32.totalorder %v31, 0
  %vm40 = vcmp.ne.s32.totalorder %v38, 0
  %vm41 = vcmp.lt.s32.totalorder %v31, 0
  %vm42 = vcmp.lt.s32.totalorder %v38, 0
  %vm43 = vmand %vm41, %vm39
  %vm44 = vmand %vm42, %vm40
  %v45 = vadd.s32 %v31, 16
  %v46 = vadd.s32 %v38, 16
  %v47 = vsel %vm43, %v45, %v31
  %v48 = vsel %vm44, %v46, %v38
  %vm49 = vcmp.ge.s32.totalorder %v47, 1
  %vm50 = vcmp.ge.s32.totalorder %v48, 1
  %vm51 = vcmp.le.s32.totalorder %v47, 14
  %vm52 = vcmp.le.s32.totalorder %v48, 14
  %v53 = vld [vmem:[#allocation2] sm:$0xff]
  %v54 = vld [vmem:[#allocation2 + $0x8] sm:$0xff]
  %v55 = vld [vmem:[#allocation2 + $0x10] sm:$0xff]
  %59 = vrot.lane.b32.xlu0 %v53, 17
  %v60 = vpop.permute.xlu0 %59
  %61 = vrot.lane.b32.xlu0 %v54, 17
  %v62 = vpop.permute.xlu0 %61
  %63 = vrot.lane.b32.xlu0 %v55, 17
  %v64 = vpop.permute.xlu0 %63
  %vm65 = vcmask 138240
  %v66 = vsel %vm65, %v60, %v62
  %v67 = vsel %vm65, %v62, %v64
  %v70 = vsel %vm49, %v66, 0.0
  %v71 = vsel %vm50, %v67, 0.0
  %v72 = vld [vmem:[%s1] sm:$0xff]
  %s73 = scalar_lea.vmem %s1, 8
  %v74 = vld [vmem:[%s73] sm:$0xff]
  %75 = vrot.lane.b32.xlu0 %v53, 16
  %v76 = vpop.permute.xlu0 %75
  %77 = vrot.lane.b32.xlu0 %v54, 16
  %v78 = vpop.permute.xlu0 %77
  %79 = vrot.lane.b32.xlu0 %v55, 16
  %v80 = vpop.permute.xlu0 %79
  %vm81 = vcmask 130048
  %v82 = vsel %vm81, %v76, %v78
  %v83 = vsel %vm81, %v78, %v80
  %vm86 = vcmask 64512
  %v88 = vsel %vm86, %v74, 0
  %90 = vmatprep.subr.mxu0 %v83
  %91 = vmatpush1.msra.mxu0 %v82
  %92 = vmatprep.subr.mxu0 0.0
  %93 = vmatpush1.msra.mxu0 0.0
  %94 = vmatprep.subr.mxu0 0.0
  %95 = vmatpush1.msra.mxu0 0.0
  %96 = vmatprep.subr.mxu0 0.0
  %97 = vmatpush1.msra.mxu0 0.0
  %98 = vmatprep.subr.mxu0 0.0
  %99 = vmatpush1.msra.mxu0 0.0
  %100 = vmatprep.subr.mxu0 0.0
  %101 = vmatpush1.msra.mxu0 0.0
  %102 = vmatprep.subr.mxu0 0.0
  %103 = vmatpush1.msra.mxu0 0.0
  %104 = vmatprep.subr.mxu0 0.0
  %105 = vmatpush1.msra.mxu0 0.0
  %106 = vmatprep.subr.mxu0 0.0
  %107 = vmatpush1.msra.mxu0 0.0
  %108 = vmatprep.subr.mxu0 0.0
  %109 = vmatpush1.msra.mxu0 0.0
  %110 = vmatprep.subr.mxu0 0.0
  %111 = vmatpush1.msra.mxu0 0.0
  %112 = vmatprep.subr.mxu0 0.0
  %113 = vmatpush1.msra.mxu0 0.0
  %114 = vmatprep.subr.mxu0 0.0
  %115 = vmatpush1.msra.mxu0 0.0
  %116 = vmatprep.subr.mxu0 0.0
  %117 = vmatpush1.msra.mxu0 0.0
  %118 = vmatprep.subr.mxu0 0.0
  %119 = vmatpush1.msra.mxu0 0.0
  %120 = vmatprep.subr.mxu0 0.0
  %121 = vmatpush1.msra.mxu0 0.0
  %122 = vmatprep.subr.mxu0 0.0
  %123 = vmatpush1.msra.mxu0 0.0
  %124 = vmatprep.subr.mxu0 0.0
  %125 = vmatpush1.msra.mxu0 0.0
  %126 = vmatprep.subr.mxu0 0.0
  %127 = vmatpush1.msra.mxu0 0.0
  %128 = vmatprep.subr.mxu0 0.0
  %129 = vmatpush1.msra.mxu0 0.0
  %130 = vmatprep.subr.mxu0 0.0
  %131 = vmatpush1.msra.mxu0 0.0
  %132 = vmatprep.subr.mxu0 0.0
  %133 = vmatpush1.msra.mxu0 0.0
  %134 = vmatprep.subr.mxu0 0.0
  %135 = vmatpush1.msra.mxu0 0.0
  %136 = vmatprep.subr.mxu0 0.0
  %137 = vmatpush1.msra.mxu0 0.0
  %138 = vmatprep.subr.mxu0 0.0
  %139 = vmatpush1.msra.mxu0 0.0
  %140 = vmatprep.subr.mxu0 0.0
  %141 = vmatpush1.msra.mxu0 0.0
  %142 = vmatprep.subr.mxu0 0.0
  %143 = vmatpush1.msra.mxu0 0.0
  %144 = vmatprep.subr.mxu0 0.0
  %145 = vmatpush1.msra.mxu0 0.0
  %146 = vmatprep.subr.mxu0 0.0
  %147 = vmatpush1.msra.mxu0 0.0
  %148 = vmatprep.subr.mxu0 0.0
  %149 = vmatpush1.msra.mxu0 0.0
  %150 = vmatprep.subr.mxu0 0.0
  %151 = vmatpush1.msra.mxu0 0.0
  %152 = vmatprep.subr.mxu0 0.0
  %153 = vmatpush1.msra.mxu0 0.0
  %154 = vmatprep.mubr.f32.mxu0 0.0
  %155 = vmatmul.mubr.f32.gmra.mrb[0].mxu0 %v88
  %v156 = vpop.f32.mrb[0].mxu0
  %v157 = vadd.f32 0.0, %v156
  %v158 = vpop.f32.mrb[0].mxu0
  %v159 = vadd.f32 0.0, %v158
  %160 = vdwg.mxu0
  %v162 = vsel %vm86, %v72, 0
  %164 = vmatprep.subr.mxu0 %v71
  %165 = vmatpush1.msra.mxu0 %v70
  %166 = vmatprep.subr.mxu0 0.0
  %167 = vmatpush1.msra.mxu0 0.0
  %168 = vmatprep.subr.mxu0 0.0
  %169 = vmatpush1.msra.mxu0 0.0
  %170 = vmatprep.subr.mxu0 0.0
  %171 = vmatpush1.msra.mxu0 0.0
  %172 = vmatprep.subr.mxu0 0.0
  %173 = vmatpush1.msra.mxu0 0.0
  %174 = vmatprep.subr.mxu0 0.0
  %175 = vmatpush1.msra.mxu0 0.0
  %176 = vmatprep.subr.mxu0 0.0
  %177 = vmatpush1.msra.mxu0 0.0
  %178 = vmatprep.subr.mxu0 0.0
  %179 = vmatpush1.msra.mxu0 0.0
  %180 = vmatprep.subr.mxu0 0.0
  %181 = vmatpush1.msra.mxu0 0.0
  %182 = vmatprep.subr.mxu0 0.0
  %183 = vmatpush1.msra.mxu0 0.0
  %184 = vmatprep.subr.mxu0 0.0
  %185 = vmatpush1.msra.mxu0 0.0
  %186 = vmatprep.subr.mxu0 0.0
  %187 = vmatpush1.msra.mxu0 0.0
  %188 = vmatprep.subr.mxu0 0.0
  %189 = vmatpush1.msra.mxu0 0.0
  %190 = vmatprep.subr.mxu0 0.0
  %191 = vmatpush1.msra.mxu0 0.0
  %192 = vmatprep.subr.mxu0 0.0
  %193 = vmatpush1.msra.mxu0 0.0
  %194 = vmatprep.subr.mxu0 0.0
  %195 = vmatpush1.msra.mxu0 0.0
  %196 = vmatprep.subr.mxu0 0.0
  %197 = vmatpush1.msra.mxu0 0.0
  %198 = vmatprep.subr.mxu0 0.0
  %199 = vmatpush1.msra.mxu0 0.0
  %200 = vmatprep.subr.mxu0 0.0
  %201 = vmatpush1.msra.mxu0 0.0
  %202 = vmatprep.subr.mxu0 0.0
  %203 = vmatpush1.msra.mxu0 0.0
  %204 = vmatprep.subr.mxu0 0.0
  %205 = vmatpush1.msra.mxu0 0.0
  %206 = vmatprep.subr.mxu0 0.0
  %207 = vmatpush1.msra.mxu0 0.0
  %208 = vmatprep.subr.mxu0 0.0
  %209 = vmatpush1.msra.mxu0 0.0
  %210 = vmatprep.subr.mxu0 0.0
  %211 = vmatpush1.msra.mxu0 0.0
  %212 = vmatprep.subr.mxu0 0.0
  %213 = vmatpush1.msra.mxu0 0.0
  %214 = vmatprep.subr.mxu0 0.0
  %215 = vmatpush1.msra.mxu0 0.0
  %216 = vmatprep.subr.mxu0 0.0
  %217 = vmatpush1.msra.mxu0 0.0
  %218 = vmatprep.subr.mxu0 0.0
  %219 = vmatpush1.msra.mxu0 0.0
  %220 = vmatprep.subr.mxu0 0.0
  %221 = vmatpush1.msra.mxu0 0.0
  %222 = vmatprep.subr.mxu0 0.0
  %223 = vmatpush1.msra.mxu0 0.0
  %224 = vmatprep.subr.mxu0 0.0
  %225 = vmatpush1.msra.mxu0 0.0
  %226 = vmatprep.subr.mxu0 0.0
  %227 = vmatpush1.msra.mxu0 0.0
  %228 = vmatprep.mubr.f32.mxu0 0.0
  %229 = vmatmul.mubr.f32.gmra.mrb[0].mxu0 %v162
  %v230 = vpop.f32.mrb[0].mxu0
  %v231 = vadd.f32 %v157, %v230
  %v232 = vpop.f32.mrb[0].mxu0
  %v233 = vadd.f32 %v159, %v232
  %234 = vdwg.mxu0
  %235 = vrot.lane.b32.xlu0 %v53, 15
  %v236 = vpop.permute.xlu0 %235
  %237 = vrot.lane.b32.xlu0 %v54, 15
  %v238 = vpop.permute.xlu0 %237
  %239 = vrot.lane.b32.xlu0 %v55, 15
  %v240 = vpop.permute.xlu0 %239
  %vm241 = vcmask 121856
  %v242 = vsel %vm241, %v236, %v238
  %v243 = vsel %vm241, %v238, %v240
  %v246 = vsel %vm51, %v242, 0.0
  %v247 = vsel %vm52, %v243, 0.0
  %s248 = scalar_lea.vmem %s1, 16
  %v249 = vld [vmem:[%s248] sm:$0xff]
  %v251 = vsel %vm86, %v249, 0
  %253 = vmatprep.subr.mxu0 %v247
  %254 = vmatpush1.msra.mxu0 %v246
  %255 = vmatprep.subr.mxu0 0.0
  %256 = vmatpush1.msra.mxu0 0.0
  %257 = vmatprep.subr.mxu0 0.0
  %258 = vmatpush1.msra.mxu0 0.0
  %259 = vmatprep.subr.mxu0 0.0
  %260 = vmatpush1.msra.mxu0 0.0
  %261 = vmatprep.subr.mxu0 0.0
  %262 = vmatpush1.msra.mxu0 0.0
  %263 = vmatprep.subr.mxu0 0.0
  %264 = vmatpush1.msra.mxu0 0.0
  %265 = vmatprep.subr.mxu0 0.0
  %266 = vmatpush1.msra.mxu0 0.0
  %267 = vmatprep.subr.mxu0 0.0
  %268 = vmatpush1.msra.mxu0 0.0
  %269 = vmatprep.subr.mxu0 0.0
  %270 = vmatpush1.msra.mxu0 0.0
  %271 = vmatprep.subr.mxu0 0.0
  %272 = vmatpush1.msra.mxu0 0.0
  %273 = vmatprep.subr.mxu0 0.0
  %274 = vmatpush1.msra.mxu0 0.0
  %275 = vmatprep.subr.mxu0 0.0
  %276 = vmatpush1.msra.mxu0 0.0
  %277 = vmatprep.subr.mxu0 0.0
  %278 = vmatpush1.msra.mxu0 0.0
  %279 = vmatprep.subr.mxu0 0.0
  %280 = vmatpush1.msra.mxu0 0.0
  %281 = vmatprep.subr.mxu0 0.0
  %282 = vmatpush1.msra.mxu0 0.0
  %283 = vmatprep.subr.mxu0 0.0
  %284 = vmatpush1.msra.mxu0 0.0
  %285 = vmatprep.subr.mxu0 0.0
  %286 = vmatpush1.msra.mxu0 0.0
  %287 = vmatprep.subr.mxu0 0.0
  %288 = vmatpush1.msra.mxu0 0.0
  %289 = vmatprep.subr.mxu0 0.0
  %290 = vmatpush1.msra.mxu0 0.0
  %291 = vmatprep.subr.mxu0 0.0
  %292 = vmatpush1.msra.mxu0 0.0
  %293 = vmatprep.subr.mxu0 0.0
  %294 = vmatpush1.msra.mxu0 0.0
  %295 = vmatprep.subr.mxu0 0.0
  %296 = vmatpush1.msra.mxu0 0.0
  %297 = vmatprep.subr.mxu0 0.0
  %298 = vmatpush1.msra.mxu0 0.0
  %299 = vmatprep.subr.mxu0 0.0
  %300 = vmatpush1.msra.mxu0 0.0
  %301 = vmatprep.subr.mxu0 0.0
  %302 = vmatpush1.msra.mxu0 0.0
  %303 = vmatprep.subr.mxu0 0.0
  %304 = vmatpush1.msra.mxu0 0.0
  %305 = vmatprep.subr.mxu0 0.0
  %306 = vmatpush1.msra.mxu0 0.0
  %307 = vmatprep.subr.mxu0 0.0
  %308 = vmatpush1.msra.mxu0 0.0
  %309 = vmatprep.subr.mxu0 0.0
  %310 = vmatpush1.msra.mxu0 0.0
  %311 = vmatprep.subr.mxu0 0.0
  %312 = vmatpush1.msra.mxu0 0.0
  %313 = vmatprep.subr.mxu0 0.0
  %314 = vmatpush1.msra.mxu0 0.0
  %315 = vmatprep.subr.mxu0 0.0
  %316 = vmatpush1.msra.mxu0 0.0
  %317 = vmatprep.mubr.f32.mxu0 0.0
  %318 = vmatmul.mubr.f32.gmra.mrb[0].mxu0 %v251
  %v319 = vpop.f32.mrb[0].mxu0
  %v320 = vadd.f32 0.0, %v319
  %v321 = vpop.f32.mrb[0].mxu0
  %v322 = vadd.f32 0.0, %v321
  %323 = vdwg.mxu0
  %v324 = vadd.f32 %v231, %v320
  %v325 = vadd.f32 %v233, %v322
  %326 = vrot.lane.b32.xlu0 %v53, 1
  %v327 = vpop.permute.xlu0 %326
  %328 = vrot.lane.b32.xlu0 %v54, 1
  %v329 = vpop.permute.xlu0 %328
  %330 = vrot.lane.b32.xlu0 %v55, 1
  %v331 = vpop.permute.xlu0 %330
  %vm332 = vcmask 7168
  %v333 = vsel %vm332, %v327, %v329
  %v334 = vsel %vm332, %v329, %v331
  %v337 = vsel %vm49, %v333, 0.0
  %v338 = vsel %vm50, %v334, 0.0
  %s339 = scalar_lea.vmem %s1, 24
  %v340 = vld [vmem:[%s339] sm:$0xff]
  %v342 = vsel %vm86, %v340, 0
  %344 = vmatprep.subr.mxu0 %v338
  %345 = vmatpush1.msra.mxu0 %v337
  %346 = vmatprep.subr.mxu0 0.0
  %347 = vmatpush1.msra.mxu0 0.0
  %348 = vmatprep.subr.mxu0 0.0
  %349 = vmatpush1.msra.mxu0 0.0
  %350 = vmatprep.subr.mxu0 0.0
  %351 = vmatpush1.msra.mxu0 0.0
  %352 = vmatprep.subr.mxu0 0.0
  %353 = vmatpush1.msra.mxu0 0.0
  %354 = vmatprep.subr.mxu0 0.0
  %355 = vmatpush1.msra.mxu0 0.0
  %356 = vmatprep.subr.mxu0 0.0
  %357 = vmatpush1.msra.mxu0 0.0
  %358 = vmatprep.subr.mxu0 0.0
  %359 = vmatpush1.msra.mxu0 0.0
  %360 = vmatprep.subr.mxu0 0.0
  %361 = vmatpush1.msra.mxu0 0.0
  %362 = vmatprep.subr.mxu0 0.0
  %363 = vmatpush1.msra.mxu0 0.0
  %364 = vmatprep.subr.mxu0 0.0
  %365 = vmatpush1.msra.mxu0 0.0
  %366 = vmatprep.subr.mxu0 0.0
  %367 = vmatpush1.msra.mxu0 0.0
  %368 = vmatprep.subr.mxu0 0.0
  %369 = vmatpush1.msra.mxu0 0.0
  %370 = vmatprep.subr.mxu0 0.0
  %371 = vmatpush1.msra.mxu0 0.0
  %372 = vmatprep.subr.mxu0 0.0
  %373 = vmatpush1.msra.mxu0 0.0
  %374 = vmatprep.subr.mxu0 0.0
  %375 = vmatpush1.msra.mxu0 0.0
  %376 = vmatprep.subr.mxu0 0.0
  %377 = vmatpush1.msra.mxu0 0.0
  %378 = vmatprep.subr.mxu0 0.0
  %379 = vmatpush1.msra.mxu0 0.0
  %380 = vmatprep.subr.mxu0 0.0
  %381 = vmatpush1.msra.mxu0 0.0
  %382 = vmatprep.subr.mxu0 0.0
  %383 = vmatpush1.msra.mxu0 0.0
  %384 = vmatprep.subr.mxu0 0.0
  %385 = vmatpush1.msra.mxu0 0.0
  %386 = vmatprep.subr.mxu0 0.0
  %387 = vmatpush1.msra.mxu0 0.0
  %388 = vmatprep.subr.mxu0 0.0
  %389 = vmatpush1.msra.mxu0 0.0
  %390 = vmatprep.subr.mxu0 0.0
  %391 = vmatpush1.msra.mxu0 0.0
  %392 = vmatprep.subr.mxu0 0.0
  %393 = vmatpush1.msra.mxu0 0.0
  %394 = vmatprep.subr.mxu0 0.0
  %395 = vmatpush1.msra.mxu0 0.0
  %396 = vmatprep.subr.mxu0 0.0
  %397 = vmatpush1.msra.mxu0 0.0
  %398 = vmatprep.subr.mxu0 0.0
  %399 = vmatpush1.msra.mxu0 0.0
  %400 = vmatprep.subr.mxu0 0.0
  %401 = vmatpush1.msra.mxu0 0.0
  %402 = vmatprep.subr.mxu0 0.0
  %403 = vmatpush1.msra.mxu0 0.0
  %404 = vmatprep.subr.mxu0 0.0
  %405 = vmatpush1.msra.mxu0 0.0
  %406 = vmatprep.subr.mxu0 0.0
  %407 = vmatpush1.msra.mxu0 0.0
  %408 = vmatprep.mubr.f32.mxu0 0.0
  %409 = vmatmul.mubr.f32.gmra.mrb[0].mxu0 %v342
  %v410 = vpop.f32.mrb[0].mxu0
  %v411 = vadd.f32 0.0, %v410
  %v412 = vpop.f32.mrb[0].mxu0
  %v413 = vadd.f32 0.0, %v412
  %414 = vdwg.mxu0
  %v415 = vadd.f32 %v324, %v411
  %v416 = vadd.f32 %v325, %v413
  %s417 = scalar_lea.vmem %s1, 32
  %v418 = vld [vmem:[%s417] sm:$0xff]
  %v420 = vsel %vm86, %v418, 0
  %422 = vmatprep.subr.mxu0 %v55
  %423 = vmatpush1.msra.mxu0 %v54
  %424 = vmatprep.subr.mxu0 0.0
  %425 = vmatpush1.msra.mxu0 0.0
  %426 = vmatprep.subr.mxu0 0.0
  %427 = vmatpush1.msra.mxu0 0.0
  %428 = vmatprep.subr.mxu0 0.0
  %429 = vmatpush1.msra.mxu0 0.0
  %430 = vmatprep.subr.mxu0 0.0
  %431 = vmatpush1.msra.mxu0 0.0
  %432 = vmatprep.subr.mxu0 0.0
  %433 = vmatpush1.msra.mxu0 0.0
  %434 = vmatprep.subr.mxu0 0.0
  %435 = vmatpush1.msra.mxu0 0.0
  %436 = vmatprep.subr.mxu0 0.0
  %437 = vmatpush1.msra.mxu0 0.0
  %438 = vmatprep.subr.mxu0 0.0
  %439 = vmatpush1.msra.mxu0 0.0
  %440 = vmatprep.subr.mxu0 0.0
  %441 = vmatpush1.msra.mxu0 0.0
  %442 = vmatprep.subr.mxu0 0.0
  %443 = vmatpush1.msra.mxu0 0.0
  %444 = vmatprep.subr.mxu0 0.0
  %445 = vmatpush1.msra.mxu0 0.0
  %446 = vmatprep.subr.mxu0 0.0
  %447 = vmatpush1.msra.mxu0 0.0
  %448 = vmatprep.subr.mxu0 0.0
  %449 = vmatpush1.msra.mxu0 0.0
  %450 = vmatprep.subr.mxu0 0.0
  %451 = vmatpush1.msra.mxu0 0.0
  %452 = vmatprep.subr.mxu0 0.0
  %453 = vmatpush1.msra.mxu0 0.0
  %454 = vmatprep.subr.mxu0 0.0
  %455 = vmatpush1.msra.mxu0 0.0
  %456 = vmatprep.subr.mxu0 0.0
  %457 = vmatpush1.msra.mxu0 0.0
  %458 = vmatprep.subr.mxu0 0.0
  %459 = vmatpush1.msra.mxu0 0.0
  %460 = vmatprep.subr.mxu0 0.0
  %461 = vmatpush1.msra.mxu0 0.0
  %462 = vmatprep.subr.mxu0 0.0
  %463 = vmatpush1.msra.mxu0 0.0
  %464 = vmatprep.subr.mxu0 0.0
  %465 = vmatpush1.msra.mxu0 0.0
  %466 = vmatprep.subr.mxu0 0.0
  %467 = vmatpush1.msra.mxu0 0.0
  %468 = vmatprep.subr.mxu0 0.0
  %469 = vmatpush1.msra.mxu0 0.0
  %470 = vmatprep.subr.mxu0 0.0
  %471 = vmatpush1.msra.mxu0 0.0
  %472 = vmatprep.subr.mxu0 0.0
  %473 = vmatpush1.msra.mxu0 0.0
  %474 = vmatprep.subr.mxu0 0.0
  %475 = vmatpush1.msra.mxu0 0.0
  %476 = vmatprep.subr.mxu0 0.0
  %477 = vmatpush1.msra.mxu0 0.0
  %478 = vmatprep.subr.mxu0 0.0
  %479 = vmatpush1.msra.mxu0 0.0
  %480 = vmatprep.subr.mxu0 0.0
  %481 = vmatpush1.msra.mxu0 0.0
  %482 = vmatprep.subr.mxu0 0.0
  %483 = vmatpush1.msra.mxu0 0.0
  %484 = vmatprep.subr.mxu0 0.0
  %485 = vmatpush1.msra.mxu0 0.0
  %486 = vmatprep.mubr.f32.mxu0 0.0
  %487 = vmatmul.mubr.f32.gmra.mrb[0].mxu0 %v420
  %v488 = vpop.f32.mrb[0].mxu0
  %v489 = vadd.f32 0.0, %v488
  %v490 = vpop.f32.mrb[0].mxu0
  %v491 = vadd.f32 0.0, %v490
  %492 = vdwg.mxu0
  %v493 = vadd.f32 %v415, %v489
  %v494 = vadd.f32 %v416, %v491
  %v495 = vld [vmem:[#allocation2 + $0x8] sm:$0xff]
  %v496 = vld [vmem:[#allocation2 + $0x10] sm:$0xff]
  %v497 = vld [vmem:[#allocation2 + $0x18] sm:$0xff]
  %501 = vrot.lane.b32.xlu0 %v495, 127
  %v502 = vpop.permute.xlu0 %501
  %503 = vrot.lane.b32.xlu0 %v496, 127
  %v504 = vpop.permute.xlu0 %503
  %505 = vrot.lane.b32.xlu0 %v497, 127
  %v506 = vpop.permute.xlu0 %505
  %vm507 = vcmask 1039360
  %v508 = vsel %vm507, %v502, %v504
  %v509 = vsel %vm507, %v504, %v506
  %v512 = vsel %vm51, %v508, 0.0
  %v513 = vsel %vm52, %v509, 0.0
  %s514 = scalar_lea.vmem %s1, 40
  %v515 = vld [vmem:[%s514] sm:$0xff]
  %v517 = vsel %vm86, %v515, 0
  %519 = vmatprep.subr.mxu0 %v513
  %520 = vmatpush1.msra.mxu0 %v512
  %521 = vmatprep.subr.mxu0 0.0
  %522 = vmatpush1.msra.mxu0 0.0
  %523 = vmatprep.subr.mxu0 0.0
  %524 = vmatpush1.msra.mxu0 0.0
  %525 = vmatprep.subr.mxu0 0.0
  %526 = vmatpush1.msra.mxu0 0.0
  %527 = vmatprep.subr.mxu0 0.0
  %528 = vmatpush1.msra.mxu0 0.0
  %529 = vmatprep.subr.mxu0 0.0
  %530 = vmatpush1.msra.mxu0 0.0
  %531 = vmatprep.subr.mxu0 0.0
  %532 = vmatpush1.msra.mxu0 0.0
  %533 = vmatprep.subr.mxu0 0.0
  %534 = vmatpush1.msra.mxu0 0.0
  %535 = vmatprep.subr.mxu0 0.0
  %536 = vmatpush1.msra.mxu0 0.0
  %537 = vmatprep.subr.mxu0 0.0
  %538 = vmatpush1.msra.mxu0 0.0
  %539 = vmatprep.subr.mxu0 0.0
  %540 = vmatpush1.msra.mxu0 0.0
  %541 = vmatprep.subr.mxu0 0.0
  %542 = vmatpush1.msra.mxu0 0.0
  %543 = vmatprep.subr.mxu0 0.0
  %544 = vmatpush1.msra.mxu0 0.0
  %545 = vmatprep.subr.mxu0 0.0
  %546 = vmatpush1.msra.mxu0 0.0
  %547 = vmatprep.subr.mxu0 0.0
  %548 = vmatpush1.msra.mxu0 0.0
  %549 = vmatprep.subr.mxu0 0.0
  %550 = vmatpush1.msra.mxu0 0.0
  %551 = vmatprep.subr.mxu0 0.0
  %552 = vmatpush1.msra.mxu0 0.0
  %553 = vmatprep.subr.mxu0 0.0
  %554 = vmatpush1.msra.mxu0 0.0
  %555 = vmatprep.subr.mxu0 0.0
  %556 = vmatpush1.msra.mxu0 0.0
  %557 = vmatprep.subr.mxu0 0.0
  %558 = vmatpush1.msra.mxu0 0.0
  %559 = vmatprep.subr.mxu0 0.0
  %560 = vmatpush1.msra.mxu0 0.0
  %561 = vmatprep.subr.mxu0 0.0
  %562 = vmatpush1.msra.mxu0 0.0
  %563 = vmatprep.subr.mxu0 0.0
  %564 = vmatpush1.msra.mxu0 0.0
  %565 = vmatprep.subr.mxu0 0.0
  %566 = vmatpush1.msra.mxu0 0.0
  %567 = vmatprep.subr.mxu0 0.0
  %568 = vmatpush1.msra.mxu0 0.0
  %569 = vmatprep.subr.mxu0 0.0
  %570 = vmatpush1.msra.mxu0 0.0
  %571 = vmatprep.subr.mxu0 0.0
  %572 = vmatpush1.msra.mxu0 0.0
  %573 = vmatprep.subr.mxu0 0.0
  %574 = vmatpush1.msra.mxu0 0.0
  %575 = vmatprep.subr.mxu0 0.0
  %576 = vmatpush1.msra.mxu0 0.0
  %577 = vmatprep.subr.mxu0 0.0
  %578 = vmatpush1.msra.mxu0 0.0
  %579 = vmatprep.subr.mxu0 0.0
  %580 = vmatpush1.msra.mxu0 0.0
  %581 = vmatprep.subr.mxu0 0.0
  %582 = vmatpush1.msra.mxu0 0.0
  %583 = vmatprep.mubr.f32.mxu0 0.0
  %584 = vmatmul.mubr.f32.gmra.mrb[0].mxu0 %v517
  %v585 = vpop.f32.mrb[0].mxu0
  %v586 = vadd.f32 0.0, %v585
  %v587 = vpop.f32.mrb[0].mxu0
  %v588 = vadd.f32 0.0, %v587
  %589 = vdwg.mxu0
  %v590 = vadd.f32 %v493, %v586
  %v591 = vadd.f32 %v494, %v588
  %592 = vrot.lane.b32.xlu0 %v495, 113
  %v593 = vpop.permute.xlu0 %592
  %594 = vrot.lane.b32.xlu0 %v496, 113
  %v595 = vpop.permute.xlu0 %594
  %596 = vrot.lane.b32.xlu0 %v497, 113
  %v597 = vpop.permute.xlu0 %596
  %vm598 = vcmask 924672
  %v599 = vsel %vm598, %v593, %v595
  %v600 = vsel %vm598, %v595, %v597
  %v603 = vsel %vm49, %v599, 0.0
  %v604 = vsel %vm50, %v600, 0.0
  %s605 = scalar_lea.vmem %s1, 48
  %v606 = vld [vmem:[%s605] sm:$0xff]
  %v608 = vsel %vm86, %v606, 0
  %610 = vmatprep.subr.mxu0 %v604
  %611 = vmatpush1.msra.mxu0 %v603
  %612 = vmatprep.subr.mxu0 0.0
  %613 = vmatpush1.msra.mxu0 0.0
  %614 = vmatprep.subr.mxu0 0.0
  %615 = vmatpush1.msra.mxu0 0.0
  %616 = vmatprep.subr.mxu0 0.0
  %617 = vmatpush1.msra.mxu0 0.0
  %618 = vmatprep.subr.mxu0 0.0
  %619 = vmatpush1.msra.mxu0 0.0
  %620 = vmatprep.subr.mxu0 0.0
  %621 = vmatpush1.msra.mxu0 0.0
  %622 = vmatprep.subr.mxu0 0.0
  %623 = vmatpush1.msra.mxu0 0.0
  %624 = vmatprep.subr.mxu0 0.0
  %625 = vmatpush1.msra.mxu0 0.0
  %626 = vmatprep.subr.mxu0 0.0
  %627 = vmatpush1.msra.mxu0 0.0
  %628 = vmatprep.subr.mxu0 0.0
  %629 = vmatpush1.msra.mxu0 0.0
  %630 = vmatprep.subr.mxu0 0.0
  %631 = vmatpush1.msra.mxu0 0.0
  %632 = vmatprep.subr.mxu0 0.0
  %633 = vmatpush1.msra.mxu0 0.0
  %634 = vmatprep.subr.mxu0 0.0
  %635 = vmatpush1.msra.mxu0 0.0
  %636 = vmatprep.subr.mxu0 0.0
  %637 = vmatpush1.msra.mxu0 0.0
  %638 = vmatprep.subr.mxu0 0.0
  %639 = vmatpush1.msra.mxu0 0.0
  %640 = vmatprep.subr.mxu0 0.0
  %641 = vmatpush1.msra.mxu0 0.0
  %642 = vmatprep.subr.mxu0 0.0
  %643 = vmatpush1.msra.mxu0 0.0
  %644 = vmatprep.subr.mxu0 0.0
  %645 = vmatpush1.msra.mxu0 0.0
  %646 = vmatprep.subr.mxu0 0.0
  %647 = vmatpush1.msra.mxu0 0.0
  %648 = vmatprep.subr.mxu0 0.0
  %649 = vmatpush1.msra.mxu0 0.0
  %650 = vmatprep.subr.mxu0 0.0
  %651 = vmatpush1.msra.mxu0 0.0
  %652 = vmatprep.subr.mxu0 0.0
  %653 = vmatpush1.msra.mxu0 0.0
  %654 = vmatprep.subr.mxu0 0.0
  %655 = vmatpush1.msra.mxu0 0.0
  %656 = vmatprep.subr.mxu0 0.0
  %657 = vmatpush1.msra.mxu0 0.0
  %658 = vmatprep.subr.mxu0 0.0
  %659 = vmatpush1.msra.mxu0 0.0
  %660 = vmatprep.subr.mxu0 0.0
  %661 = vmatpush1.msra.mxu0 0.0
  %662 = vmatprep.subr.mxu0 0.0
  %663 = vmatpush1.msra.mxu0 0.0
  %664 = vmatprep.subr.mxu0 0.0
  %665 = vmatpush1.msra.mxu0 0.0
  %666 = vmatprep.subr.mxu0 0.0
  %667 = vmatpush1.msra.mxu0 0.0
  %668 = vmatprep.subr.mxu0 0.0
  %669 = vmatpush1.msra.mxu0 0.0
  %670 = vmatprep.subr.mxu0 0.0
  %671 = vmatpush1.msra.mxu0 0.0
  %672 = vmatprep.subr.mxu0 0.0
  %673 = vmatpush1.msra.mxu0 0.0
  %674 = vmatprep.mubr.f32.mxu0 0.0
  %675 = vmatmul.mubr.f32.gmra.mrb[0].mxu0 %v608
  %v676 = vpop.f32.mrb[0].mxu0
  %v677 = vadd.f32 0.0, %v676
  %v678 = vpop.f32.mrb[0].mxu0
  %v679 = vadd.f32 0.0, %v678
  %680 = vdwg.mxu0
  %v681 = vadd.f32 %v590, %v677
  %v682 = vadd.f32 %v591, %v679
  %s683 = scalar_lea.vmem %s1, 56
  %v684 = vld [vmem:[%s683] sm:$0xff]
  %685 = vrot.lane.b32.xlu0 %v495, 112
  %v686 = vpop.permute.xlu0 %685
  %687 = vrot.lane.b32.xlu0 %v496, 112
  %v688 = vpop.permute.xlu0 %687
  %689 = vrot.lane.b32.xlu0 %v497, 112
  %v690 = vpop.permute.xlu0 %689
  %vm691 = vcmask 916480
  %v692 = vsel %vm691, %v686, %v688
  %v693 = vsel %vm691, %v688, %v690
  %v697 = vsel %vm86, %v684, 0
  %699 = vmatprep.subr.mxu0 %v693
  %700 = vmatpush1.msra.mxu0 %v692
  %701 = vmatprep.subr.mxu0 0.0
  %702 = vmatpush1.msra.mxu0 0.0
  %703 = vmatprep.subr.mxu0 0.0
  %704 = vmatpush1.msra.mxu0 0.0
  %705 = vmatprep.subr.mxu0 0.0
  %706 = vmatpush1.msra.mxu0 0.0
  %707 = vmatprep.subr.mxu0 0.0
  %708 = vmatpush1.msra.mxu0 0.0
  %709 = vmatprep.subr.mxu0 0.0
  %710 = vmatpush1.msra.mxu0 0.0
  %711 = vmatprep.subr.mxu0 0.0
  %712 = vmatpush1.msra.mxu0 0.0
  %713 = vmatprep.subr.mxu0 0.0
  %714 = vmatpush1.msra.mxu0 0.0
  %715 = vmatprep.subr.mxu0 0.0
  %716 = vmatpush1.msra.mxu0 0.0
  %717 = vmatprep.subr.mxu0 0.0
  %718 = vmatpush1.msra.mxu0 0.0
  %719 = vmatprep.subr.mxu0 0.0
  %720 = vmatpush1.msra.mxu0 0.0
  %721 = vmatprep.subr.mxu0 0.0
  %722 = vmatpush1.msra.mxu0 0.0
  %723 = vmatprep.subr.mxu0 0.0
  %724 = vmatpush1.msra.mxu0 0.0
  %725 = vmatprep.subr.mxu0 0.0
  %726 = vmatpush1.msra.mxu0 0.0
  %727 = vmatprep.subr.mxu0 0.0
  %728 = vmatpush1.msra.mxu0 0.0
  %729 = vmatprep.subr.mxu0 0.0
  %730 = vmatpush1.msra.mxu0 0.0
  %731 = vmatprep.subr.mxu0 0.0
  %732 = vmatpush1.msra.mxu0 0.0
  %733 = vmatprep.subr.mxu0 0.0
  %734 = vmatpush1.msra.mxu0 0.0
  %735 = vmatprep.subr.mxu0 0.0
  %736 = vmatpush1.msra.mxu0 0.0
  %737 = vmatprep.subr.mxu0 0.0
  %738 = vmatpush1.msra.mxu0 0.0
  %739 = vmatprep.subr.mxu0 0.0
  %740 = vmatpush1.msra.mxu0 0.0
  %741 = vmatprep.subr.mxu0 0.0
  %742 = vmatpush1.msra.mxu0 0.0
  %743 = vmatprep.subr.mxu0 0.0
  %744 = vmatpush1.msra.mxu0 0.0
  %745 = vmatprep.subr.mxu0 0.0
  %746 = vmatpush1.msra.mxu0 0.0
  %747 = vmatprep.subr.mxu0 0.0
  %748 = vmatpush1.msra.mxu0 0.0
  %749 = vmatprep.subr.mxu0 0.0
  %750 = vmatpush1.msra.mxu0 0.0
  %751 = vmatprep.subr.mxu0 0.0
  %752 = vmatpush1.msra.mxu0 0.0
  %753 = vmatprep.subr.mxu0 0.0
  %754 = vmatpush1.msra.mxu0 0.0
  %755 = vmatprep.subr.mxu0 0.0
  %756 = vmatpush1.msra.mxu0 0.0
  %757 = vmatprep.subr.mxu0 0.0
  %758 = vmatpush1.msra.mxu0 0.0
  %759 = vmatprep.subr.mxu0 0.0
  %760 = vmatpush1.msra.mxu0 0.0
  %761 = vmatprep.subr.mxu0 0.0
  %762 = vmatpush1.msra.mxu0 0.0
  %763 = vmatprep.mubr.f32.mxu0 0.0
  %764 = vmatmul.mubr.f32.gmra.mrb[0].mxu0 %v697
  %v765 = vpop.f32.mrb[0].mxu0
  %v766 = vadd.f32 0.0, %v765
  %v767 = vpop.f32.mrb[0].mxu0
  %v768 = vadd.f32 0.0, %v767
  %769 = vdwg.mxu0
  %v770 = vadd.f32 %v681, %v766
  %v771 = vadd.f32 %v682, %v768
  %772 = vrot.lane.b32.xlu0 %v495, 111
  %v773 = vpop.permute.xlu0 %772
  %774 = vrot.lane.b32.xlu0 %v496, 111
  %v775 = vpop.permute.xlu0 %774
  %776 = vrot.lane.b32.xlu0 %v497, 111
  %v777 = vpop.permute.xlu0 %776
  %vm778 = vcmask 908288
  %v779 = vsel %vm778, %v773, %v775
  %v780 = vsel %vm778, %v775, %v777
  %v783 = vsel %vm51, %v779, 0.0
  %v784 = vsel %vm52, %v780, 0.0
  %s785 = scalar_lea.vmem %s1, 64
  %v786 = vld [vmem:[%s785] sm:$0xff]
  %v788 = vsel %vm86, %v786, 0
  %790 = vmatprep.subr.mxu0 %v784
  %791 = vmatpush1.msra.mxu0 %v783
  %792 = vmatprep.subr.mxu0 0.0
  %793 = vmatpush1.msra.mxu0 0.0
  %794 = vmatprep.subr.mxu0 0.0
  %795 = vmatpush1.msra.mxu0 0.0
  %796 = vmatprep.subr.mxu0 0.0
  %797 = vmatpush1.msra.mxu0 0.0
  %798 = vmatprep.subr.mxu0 0.0
  %799 = vmatpush1.msra.mxu0 0.0
  %800 = vmatprep.subr.mxu0 0.0
  %801 = vmatpush1.msra.mxu0 0.0
  %802 = vmatprep.subr.mxu0 0.0
  %803 = vmatpush1.msra.mxu0 0.0
  %804 = vmatprep.subr.mxu0 0.0
  %805 = vmatpush1.msra.mxu0 0.0
  %806 = vmatprep.subr.mxu0 0.0
  %807 = vmatpush1.msra.mxu0 0.0
  %808 = vmatprep.subr.mxu0 0.0
  %809 = vmatpush1.msra.mxu0 0.0
  %810 = vmatprep.subr.mxu0 0.0
  %811 = vmatpush1.msra.mxu0 0.0
  %812 = vmatprep.subr.mxu0 0.0
  %813 = vmatpush1.msra.mxu0 0.0
  %814 = vmatprep.subr.mxu0 0.0
  %815 = vmatpush1.msra.mxu0 0.0
  %816 = vmatprep.subr.mxu0 0.0
  %817 = vmatpush1.msra.mxu0 0.0
  %818 = vmatprep.subr.mxu0 0.0
  %819 = vmatpush1.msra.mxu0 0.0
  %820 = vmatprep.subr.mxu0 0.0
  %821 = vmatpush1.msra.mxu0 0.0
  %822 = vmatprep.subr.mxu0 0.0
  %823 = vmatpush1.msra.mxu0 0.0
  %824 = vmatprep.subr.mxu0 0.0
  %825 = vmatpush1.msra.mxu0 0.0
  %826 = vmatprep.subr.mxu0 0.0
  %827 = vmatpush1.msra.mxu0 0.0
  %828 = vmatprep.subr.mxu0 0.0
  %829 = vmatpush1.msra.mxu0 0.0
  %830 = vmatprep.subr.mxu0 0.0
  %831 = vmatpush1.msra.mxu0 0.0
  %832 = vmatprep.subr.mxu0 0.0
  %833 = vmatpush1.msra.mxu0 0.0
  %834 = vmatprep.subr.mxu0 0.0
  %835 = vmatpush1.msra.mxu0 0.0
  %836 = vmatprep.subr.mxu0 0.0
  %837 = vmatpush1.msra.mxu0 0.0
  %838 = vmatprep.subr.mxu0 0.0
  %839 = vmatpush1.msra.mxu0 0.0
  %840 = vmatprep.subr.mxu0 0.0
  %841 = vmatpush1.msra.mxu0 0.0
  %842 = vmatprep.subr.mxu0 0.0
  %843 = vmatpush1.msra.mxu0 0.0
  %844 = vmatprep.subr.mxu0 0.0
  %845 = vmatpush1.msra.mxu0 0.0
  %846 = vmatprep.subr.mxu0 0.0
  %847 = vmatpush1.msra.mxu0 0.0
  %848 = vmatprep.subr.mxu0 0.0
  %849 = vmatpush1.msra.mxu0 0.0
  %850 = vmatprep.subr.mxu0 0.0
  %851 = vmatpush1.msra.mxu0 0.0
  %852 = vmatprep.subr.mxu0 0.0
  %853 = vmatpush1.msra.mxu0 0.0
  %854 = vmatprep.mubr.f32.mxu0 0.0
  %855 = vmatmul.mubr.f32.gmra.mrb[0].mxu0 %v788
  %v856 = vpop.f32.mrb[0].mxu0
  %v857 = vadd.f32 0.0, %v856
  %v858 = vpop.f32.mrb[0].mxu0
  %v859 = vadd.f32 0.0, %v858
  %860 = vdwg.mxu0
  %v861 = vadd.f32 %v770, %v857
  %v862 = vadd.f32 %v771, %v859
  %v863 = vld [vmem:[%s2] sm:$0xff]
  %865 = vset.pattern.permute.xlu0 0
  %866 = vperm.xlu0 %865, %v863
  %v867 = vpop.permute.xlu0 %866
  %v869 = vadd.f32 %v861, %v867
  %v870 = vadd.f32 %v862, %v867
  %871 = vst [vmem:[%s3] sm:$0xff] %v869
  %872 = vst [vmem:[%s3 + $0x8] sm:$0xff] %v870
  // Predicated region
  $region14: #{forward.1} parent=0 // pred_check
    _
  $region15: #{forward.1} parent=0 // pred_check_branch
    %874 = sbr.rel (0) target = $region17
  $region16: #{forward.1} parent=0 // pred_region
    _
  $region17: #{forward.1} parent=0 // pred_fallthru
    _
  // Predicated region
  $region18: #{forward.1} parent=0 // pred_check
    _
  $region19: #{forward.1} parent=0 // pred_check_branch
    %876 = sbr.rel (0) target = $region21
  $region20: #{forward.1} parent=0 // pred_region
    _
  $region21: #{forward.1} parent=0 // pred_fallthru
    _

</llo_original>
